<compile_context>
chip_gen: v7x
topology: tpu7x:2x2x1
jax: 0.10.0
libtpu: 0.0.40
codegen_flags: <defaults>
</compile_context>

<pallas_src>
import jax
import jax.numpy as jnp
import numpy as np
from jax.experimental import pallas as pl
from jax.experimental.pallas import tpu as pltpu

# ---------------- model config (consistent with the module instantiation) ----------------
N, CIN, H, W = 2, 4, 16, 16          # input  (N, C, H, W)
COUT, K, PAD = 8, 3, 1               # Conv2d(4, 8, kernel=3, stride=1, padding=1)
POOL = 2                             # MaxPool2d(2, 2, 0)
PH, PW = H // POOL, W // POOL        # pooled spatial (8, 8)
S = PH * PW                          # 64 pooled positions per sample
M = N * S                            # 128
KKC = K * K * CIN                    # 36
FC1_IN, FC1_OUT = COUT * S, 32       # Linear(512, 32) + ReLU
FC2_OUT = 10                         # Linear(32, 10)


# ---------------- single fused Pallas kernel ----------------
def fused_mynet_kernel(pT_ref, wcT_ref, bc_ref, w1_ref, b1_ref, w2_ref, b2_ref, o_ref):
    # Conv as one lane-dense MXU matmul: (COUT, KKC) @ (KKC, 4*M) -> (COUT, 4*M).
    # Columns of pT are ordered (pool_pos p, sample n, pooled spatial s).
    conv = jnp.dot(wcT_ref[...], pT_ref[...], preferred_element_type=jnp.float32)

    # 2x2 maxpool = max over the 4 pool positions: 128-aligned lane slices.
    pooled = jnp.maximum(jnp.maximum(conv[:, 0 * M:1 * M], conv[:, 1 * M:2 * M]),
                         jnp.maximum(conv[:, 2 * M:3 * M], conv[:, 3 * M:4 * M]))
    # bias is per-channel (constant over the pool window) and ReLU is monotone, so
    # max -> +bias -> relu == conv+bias -> relu -> maxpool.
    pooled = jnp.maximum(pooled + bc_ref[...], 0.0)           # (COUT, N*S)

    # Flatten to PyTorch NCHW order: feat[n, c*S + s] = pooled[c, n*S + s].
    # Static sublane slices + lane concat (pure in-register relayout, no transpose op).
    rows = []
    for n in range(N):
        blk = pooled[:, n * S:(n + 1) * S]                    # (COUT, S)
        rows.append(jnp.concatenate([blk[c:c + 1, :] for c in range(COUT)], axis=1))
    feat = jnp.concatenate(rows, axis=0)                      # (N, FC1_IN)

    # fc1 + ReLU
    h = jnp.dot(feat, w1_ref[...], preferred_element_type=jnp.float32) + b1_ref[...]
    h = jnp.maximum(h, 0.0)

    # fc2 + log_softmax(dim=1), numerically stable
    logits = jnp.dot(h, w2_ref[...], preferred_element_type=jnp.float32) + b2_ref[...]
    z = logits - jnp.max(logits, axis=1, keepdims=True)
    o_ref[...] = z - jnp.log(jnp.sum(jnp.exp(z), axis=1, keepdims=True))


def _vmem_spec():
    return pl.BlockSpec(memory_space=pltpu.MemorySpace.VMEM)


def mynet_pallas(pT, wcT, bc, w1, b1, w2, b2):
    return pl.pallas_call(
        fused_mynet_kernel,
        out_shape=jax.ShapeDtypeStruct((N, FC2_OUT), jnp.float32),
        in_specs=[_vmem_spec() for _ in range(7)],
        out_specs=_vmem_spec(),
    )(pT, wcT, bc, w1, b1, w2, b2)


# ---------------- glue (layout only, all jitted with the kernel) ----------------
def build_patches_T(x_nhwc):
    """Transposed im2col grouped by 2x2 pool position.

    Returns (KKC, 4*N*S) with column index p*M + n*S + (ph*PW + pw) and row index
    (kh, kw, cin) flattened row-major (matches w_hwio.reshape(KKC, COUT)).
    """
    xp = jnp.pad(x_nhwc, ((0, 0), (PAD, PAD), (PAD, PAD), (0, 0)))         # (N,18,18,CIN)
    cols = [xp[:, kh:kh + H, kw:kw + W, :] for kh in range(K) for kw in range(K)]
    pf = jnp.concatenate(cols, axis=-1)                                    # (N,H,W,KKC)
    pf = pf.reshape(N, PH, POOL, PW, POOL, KKC)                            # (n,ph,di,pw,dj,k)
    pf = pf.transpose(5, 2, 4, 0, 1, 3)                                    # (k,di,dj,n,ph,pw)
    return pf.reshape(KKC, POOL * POOL * M)                                # (36, 512)


def prepare_params(w_hwio, b_conv, w1, b1, w2, b2):
    """One-time weight re-layout (done at parameter-prep time, not per forward)."""
    wcT = w_hwio.reshape(KKC, COUT).T                   # (COUT, KKC), cols = (kh, kw, cin)
    return (wcT, b_conv.reshape(COUT, 1), w1, b1.reshape(1, FC1_OUT),
            w2, b2.reshape(1, FC2_OUT))


@jax.jit
def mynet_forward(x_nchw, kparams):
    x_nhwc = jnp.transpose(x_nchw, (0, 2, 3, 1))
    pT = build_patches_T(x_nhwc)
    return mynet_pallas(pT, *kparams)


# ---------------- pure-JAX reference (for correctness check) ----------------
def reference(x_nchw, params):
    w_hwio, b_conv, w1, b1, w2, b2 = params
    x = jnp.transpose(x_nchw, (0, 2, 3, 1))
    y = jax.lax.conv_general_dilated(
        x, w_hwio, window_strides=(1, 1), padding=((PAD, PAD), (PAD, PAD)),
        dimension_numbers=('NHWC', 'HWIO', 'NHWC'))
    y = jax.nn.relu(y + b_conv[None, None, None, :])
    y = jax.lax.reduce_window(y, -jnp.inf, jax.lax.max,
                              (1, POOL, POOL, 1), (1, POOL, POOL, 1), 'VALID')
    feat = jnp.transpose(y, (0, 3, 1, 2)).reshape(N, -1)
    h = jax.nn.relu(feat @ w1 + b1)
    logits = h @ w2 + b2
    return jax.nn.log_softmax(logits, axis=1)


# ---------------- main ----------------
if __name__ == "__main__":
    key = jax.random.PRNGKey(0)
    k_x, k_cw, k_cb, k_w1, k_b1, k_w2, k_b2 = jax.random.split(key, 7)

    x = jax.random.normal(k_x, (N, CIN, H, W), dtype=jnp.float32)

    # deterministic synthetic parameters (HWIO conv weight; row-major FC weights)
    w_hwio = jax.random.normal(k_cw, (K, K, CIN, COUT), jnp.float32) * 0.1
    b_conv = jax.random.normal(k_cb, (COUT,), jnp.float32) * 0.1
    w1 = jax.random.normal(k_w1, (FC1_IN, FC1_OUT), jnp.float32) * 0.05
    b1 = jax.random.normal(k_b1, (FC1_OUT,), jnp.float32) * 0.05
    w2 = jax.random.normal(k_w2, (FC1_OUT, FC2_OUT), jnp.float32) * 0.05
    b2 = jax.random.normal(k_b2, (FC2_OUT,), jnp.float32) * 0.05
    params = (w_hwio, b_conv, w1, b1, w2, b2)

    kparams = prepare_params(*params)   # one-time weight re-layout

    out = jax.block_until_ready(mynet_forward(x, kparams))
    ref = jax.block_until_ready(reference(x, params))

    assert out.shape == (N, FC2_OUT), out.shape
    np.testing.assert_allclose(np.asarray(out), np.asarray(ref), rtol=1e-3, atol=1e-3)

    print("KERNEL_OK")
</pallas_src>

<mosaic_0001>
module attributes {stable_mosaic.version = 11 : i64} {
  func.func @fused_mynet_kernel(%arg0: memref<36x512xf32, #tpu.memory_space<vmem>>, %arg1: memref<8x36xf32, #tpu.memory_space<vmem>>, %arg2: memref<8x1xf32, #tpu.memory_space<vmem>>, %arg3: memref<512x32xf32, #tpu.memory_space<vmem>>, %arg4: memref<1x32xf32, #tpu.memory_space<vmem>>, %arg5: memref<32x10xf32, #tpu.memory_space<vmem>>, %arg6: memref<1x10xf32, #tpu.memory_space<vmem>>, %arg7: memref<2x10xf32, #tpu.memory_space<vmem>>) attributes {dimension_semantics = [], scalar_prefetch = 0 : i64, scratch_operands = 0 : i64, tpu.core_type = #tpu.core_type<tc>} {
    %c0 = arith.constant 0 : index
    %c0_0 = arith.constant 0 : index
    %0 = vector.load %arg1[%c0, %c0_0] : memref<8x36xf32, #tpu.memory_space<vmem>>, vector<8x36xf32>
    %c0_1 = arith.constant 0 : index
    %c0_2 = arith.constant 0 : index
    %1 = vector.load %arg0[%c0_1, %c0_2] : memref<36x512xf32, #tpu.memory_space<vmem>>, vector<36x512xf32>
    %cst = arith.constant dense<0.000000e+00> : vector<8x512xf32>
    %2 = tpu.matmul %0, %1, %cst {dimension_numbers = #tpu.dot_dimension_numbers<[1], [0], [0], [1], [0, 0, 1, 1], [], []>} : vector<8x36xf32>, vector<36x512xf32>, vector<8x512xf32> -> vector<8x512xf32>
    %3 = vector.extract_strided_slice %2 {offsets = [0, 0], sizes = [8, 128], strides = [1, 1]} : vector<8x512xf32> to vector<8x128xf32>
    %4 = vector.extract_strided_slice %2 {offsets = [0, 128], sizes = [8, 128], strides = [1, 1]} : vector<8x512xf32> to vector<8x128xf32>
    %5 = arith.maximumf %3, %4 : vector<8x128xf32>
    %6 = vector.extract_strided_slice %2 {offsets = [0, 256], sizes = [8, 128], strides = [1, 1]} : vector<8x512xf32> to vector<8x128xf32>
    %7 = vector.extract_strided_slice %2 {offsets = [0, 384], sizes = [8, 128], strides = [1, 1]} : vector<8x512xf32> to vector<8x128xf32>
    %8 = arith.maximumf %6, %7 : vector<8x128xf32>
    %9 = arith.maximumf %5, %8 : vector<8x128xf32>
    %c0_3 = arith.constant 0 : index
    %c0_4 = arith.constant 0 : index
    %10 = vector.load %arg2[%c0_3, %c0_4] : memref<8x1xf32, #tpu.memory_space<vmem>>, vector<8x1xf32>
    %11 = vector.broadcast %10 : vector<8x1xf32> to vector<8x128xf32>
    %12 = arith.addf %9, %11 : vector<8x128xf32>
    %cst_5 = arith.constant 0.000000e+00 : f32
    %13 = vector.broadcast %cst_5 : f32 to vector<8x128xf32>
    %14 = arith.maximumf %12, %13 : vector<8x128xf32>
    %15 = vector.extract_strided_slice %14 {offsets = [0, 0], sizes = [8, 64], strides = [1, 1]} : vector<8x128xf32> to vector<8x64xf32>
    %16 = vector.extract_strided_slice %15 {offsets = [0, 0], sizes = [1, 64], strides = [1, 1]} : vector<8x64xf32> to vector<1x64xf32>
    %17 = vector.extract_strided_slice %15 {offsets = [1, 0], sizes = [1, 64], strides = [1, 1]} : vector<8x64xf32> to vector<1x64xf32>
    %18 = vector.extract_strided_slice %15 {offsets = [2, 0], sizes = [1, 64], strides = [1, 1]} : vector<8x64xf32> to vector<1x64xf32>
    %19 = vector.extract_strided_slice %15 {offsets = [3, 0], sizes = [1, 64], strides = [1, 1]} : vector<8x64xf32> to vector<1x64xf32>
    %20 = vector.extract_strided_slice %15 {offsets = [4, 0], sizes = [1, 64], strides = [1, 1]} : vector<8x64xf32> to vector<1x64xf32>
    %21 = vector.extract_strided_slice %15 {offsets = [5, 0], sizes = [1, 64], strides = [1, 1]} : vector<8x64xf32> to vector<1x64xf32>
    %22 = vector.extract_strided_slice %15 {offsets = [6, 0], sizes = [1, 64], strides = [1, 1]} : vector<8x64xf32> to vector<1x64xf32>
    %23 = vector.extract_strided_slice %15 {offsets = [7, 0], sizes = [1, 64], strides = [1, 1]} : vector<8x64xf32> to vector<1x64xf32>
    %24 = tpu.concatenate %16, %17, %18, %19, %20, %21, %22, %23 in 1 : vector<1x64xf32>, vector<1x64xf32>, vector<1x64xf32>, vector<1x64xf32>, vector<1x64xf32>, vector<1x64xf32>, vector<1x64xf32>, vector<1x64xf32> -> vector<1x512xf32>
    %25 = vector.extract_strided_slice %14 {offsets = [0, 64], sizes = [8, 64], strides = [1, 1]} : vector<8x128xf32> to vector<8x64xf32>
    %26 = vector.extract_strided_slice %25 {offsets = [0, 0], sizes = [1, 64], strides = [1, 1]} : vector<8x64xf32> to vector<1x64xf32>
    %27 = vector.extract_strided_slice %25 {offsets = [1, 0], sizes = [1, 64], strides = [1, 1]} : vector<8x64xf32> to vector<1x64xf32>
    %28 = vector.extract_strided_slice %25 {offsets = [2, 0], sizes = [1, 64], strides = [1, 1]} : vector<8x64xf32> to vector<1x64xf32>
    %29 = vector.extract_strided_slice %25 {offsets = [3, 0], sizes = [1, 64], strides = [1, 1]} : vector<8x64xf32> to vector<1x64xf32>
    %30 = vector.extract_strided_slice %25 {offsets = [4, 0], sizes = [1, 64], strides = [1, 1]} : vector<8x64xf32> to vector<1x64xf32>
    %31 = vector.extract_strided_slice %25 {offsets = [5, 0], sizes = [1, 64], strides = [1, 1]} : vector<8x64xf32> to vector<1x64xf32>
    %32 = vector.extract_strided_slice %25 {offsets = [6, 0], sizes = [1, 64], strides = [1, 1]} : vector<8x64xf32> to vector<1x64xf32>
    %33 = vector.extract_strided_slice %25 {offsets = [7, 0], sizes = [1, 64], strides = [1, 1]} : vector<8x64xf32> to vector<1x64xf32>
    %34 = tpu.concatenate %26, %27, %28, %29, %30, %31, %32, %33 in 1 : vector<1x64xf32>, vector<1x64xf32>, vector<1x64xf32>, vector<1x64xf32>, vector<1x64xf32>, vector<1x64xf32>, vector<1x64xf32>, vector<1x64xf32> -> vector<1x512xf32>
    %35 = tpu.concatenate %24, %34 in 0 : vector<1x512xf32>, vector<1x512xf32> -> vector<2x512xf32>
    %c0_6 = arith.constant 0 : index
    %c0_7 = arith.constant 0 : index
    %36 = vector.load %arg3[%c0_6, %c0_7] : memref<512x32xf32, #tpu.memory_space<vmem>>, vector<512x32xf32>
    %cst_8 = arith.constant dense<0.000000e+00> : vector<2x32xf32>
    %37 = tpu.matmul %35, %36, %cst_8 {dimension_numbers = #tpu.dot_dimension_numbers<[1], [0], [0], [1], [0, 0, 1, 1], [], []>} : vector<2x512xf32>, vector<512x32xf32>, vector<2x32xf32> -> vector<2x32xf32>
    %c0_9 = arith.constant 0 : index
    %c0_10 = arith.constant 0 : index
    %38 = vector.load %arg4[%c0_9, %c0_10] : memref<1x32xf32, #tpu.memory_space<vmem>>, vector<1x32xf32>
    %39 = vector.broadcast %38 : vector<1x32xf32> to vector<2x32xf32>
    %40 = arith.addf %37, %39 : vector<2x32xf32>
    %cst_11 = arith.constant 0.000000e+00 : f32
    %41 = vector.broadcast %cst_11 : f32 to vector<2x32xf32>
    %42 = arith.maximumf %40, %41 : vector<2x32xf32>
    %c0_12 = arith.constant 0 : index
    %c0_13 = arith.constant 0 : index
    %43 = vector.load %arg5[%c0_12, %c0_13] : memref<32x10xf32, #tpu.memory_space<vmem>>, vector<32x10xf32>
    %cst_14 = arith.constant dense<0.000000e+00> : vector<2x10xf32>
    %44 = tpu.matmul %42, %43, %cst_14 {dimension_numbers = #tpu.dot_dimension_numbers<[1], [0], [0], [1], [0, 0, 1, 1], [], []>} : vector<2x32xf32>, vector<32x10xf32>, vector<2x10xf32> -> vector<2x10xf32>
    %c0_15 = arith.constant 0 : index
    %c0_16 = arith.constant 0 : index
    %45 = vector.load %arg6[%c0_15, %c0_16] : memref<1x10xf32, #tpu.memory_space<vmem>>, vector<1x10xf32>
    %46 = vector.broadcast %45 : vector<1x10xf32> to vector<2x10xf32>
    %47 = arith.addf %44, %46 : vector<2x10xf32>
    %cst_17 = arith.constant dense<0xFF800000> : vector<2xf32>
    %48 = vector.multi_reduction <maximumf>, %47, %cst_17 [1] : vector<2x10xf32> to vector<2xf32>
    %49 = vector.shape_cast %48 : vector<2xf32> to vector<2x1xf32>
    %50 = vector.broadcast %49 : vector<2x1xf32> to vector<2x10xf32>
    %51 = arith.subf %47, %50 : vector<2x10xf32>
    %52 = math.exp %51 : vector<2x10xf32>
    %cst_18 = arith.constant dense<0.000000e+00> : vector<2xf32>
    %53 = vector.multi_reduction <add>, %52, %cst_18 [1] : vector<2x10xf32> to vector<2xf32>
    %54 = vector.shape_cast %53 : vector<2xf32> to vector<2x1xf32>
    %55 = math.log %54 : vector<2x1xf32>
    %56 = vector.broadcast %55 : vector<2x1xf32> to vector<2x10xf32>
    %57 = arith.subf %51, %56 : vector<2x10xf32>
    %c0_19 = arith.constant 0 : index
    %c0_20 = arith.constant 0 : index
    %58 = vector.load %arg7[%c0_19, %c0_20] : memref<2x10xf32, #tpu.memory_space<vmem>>, vector<2x10xf32>
    tpu.vector_store %arg7[%c0_19, %c0_20], %57 {strides = array<i32>} : memref<2x10xf32, #tpu.memory_space<vmem>>, vector<2x10xf32>,
    return
  }
}

</mosaic_0001>

<llo_original>
// kernel: mynet_forward.1
$region0: #{mynet_forward.1}
  #allocation0 [shape = 'u32[]', space=smem, size = 0x4, offset = 0x4, fixed_abs, tag = 'smem constant byte address 0x4 - core index']
  #allocation1 [shape = 'u32[144,128]{1,0:T(1,128)}', space=vmem, size = 0x12000, scoped, tag = 'internal scratch']
  %s0 = inlined_call_operand.vmem [shape: f32[36,512], index: 0, kind: input, shape index: {}]
  %s1 = inlined_call_operand.vmem [shape: f32[8,36], index: 1, kind: input, shape index: {}]
  %s2 = inlined_call_operand.vmem [shape: f32[8,1], index: 2, kind: input, shape index: {}]
  %s3 = inlined_call_operand.vmem [shape: f32[512,32], index: 3, kind: input, shape index: {}]
  %s4 = inlined_call_operand.vmem [shape: f32[1,32], index: 4, kind: input, shape index: {}]
  %s5 = inlined_call_operand.vmem [shape: f32[32,10], index: 5, kind: input, shape index: {}]
  %s6 = inlined_call_operand.vmem [shape: f32[1,10], index: 6, kind: input, shape index: {}]
  %s7 = inlined_call_operand.hbm [shape: f32[2,10], index: 7, kind: output, shape index: {}]
  %s8 = sld [smem:[#allocation0]]
  $region38: #{mynet_forward.1} parent=0
    _
  %s10 = ssub.s32 1, %s8
  %s11 = scalar_select 0, %s10, %s8
  $region1: #{mynet_forward.1} parent=0
    #allocation2 [shape = 'u8[1024]{0}', space=vmem, size = 0x400, scoped, tag = 'output window, operand 0, single buffered']
    #allocation3 [shape = 's32[1]{0}', space=sflag, size = 0x4, scoped, tag = 'scoped memory for mynet_forward.1']
    %12 = vsyncpa [#allocation3], 0
    // Predicated region
    $region2: #{mynet_forward.1} parent=1 // pred_check
      _
    $region3: #{mynet_forward.1} parent=1 // pred_check_branch
      %14 = sbr.rel (0) target = $region5
    $region4: #{mynet_forward.1} parent=1 // pred_region
      _
    $region5: #{mynet_forward.1} parent=1 // pred_fallthru
      _
    // Predicated region
    $region6: #{mynet_forward.1} parent=1 // pred_check
      _
    $region7: #{mynet_forward.1} parent=1 // pred_check_branch
      %16 = sbr.rel (0) target = $region9
    $region8: #{mynet_forward.1} parent=1 // pred_region
      _
    $region9: #{mynet_forward.1} parent=1 // pred_fallthru
      _
    // Predicated region
    $region10: #{mynet_forward.1} parent=1 // pred_check
      _
    $region11: #{mynet_forward.1} parent=1 // pred_check_branch
      %18 = sbr.rel (0) target = $region13
    $region12: #{mynet_forward.1} parent=1 // pred_region
      _
    $region13: #{mynet_forward.1} parent=1 // pred_fallthru
      _
    // Predicated region
    $region14: #{mynet_forward.1} parent=1 // pred_check
      _
    $region15: #{mynet_forward.1} parent=1 // pred_check_branch
      %20 = sbr.rel (0) target = $region17
    $region16: #{mynet_forward.1} parent=1 // pred_region
      _
    $region17: #{mynet_forward.1} parent=1 // pred_fallthru
      _
    // Predicated region
    $region18: #{mynet_forward.1} parent=1 // pred_check
      _
    $region19: #{mynet_forward.1} parent=1 // pred_check_branch
      %22 = sbr.rel (0) target = $region21
    $region20: #{mynet_forward.1} parent=1 // pred_region
      _
    $region21: #{mynet_forward.1} parent=1 // pred_fallthru
      _
    // Predicated region
    $region22: #{mynet_forward.1} parent=1 // pred_check
      _
    $region23: #{mynet_forward.1} parent=1 // pred_check_branch
      %24 = sbr.rel (0) target = $region25
    $region24: #{mynet_forward.1} parent=1 // pred_region
      _
    $region25: #{mynet_forward.1} parent=1 // pred_fallthru
      _
    // Predicated region
    $region26: #{mynet_forward.1} parent=1 // pred_check
      _
    $region27: #{mynet_forward.1} parent=1 // pred_check_branch
      %26 = sbr.rel (0) target = $region29
    $region28: #{mynet_forward.1} parent=1 // pred_region
      _
    $region29: #{mynet_forward.1} parent=1 // pred_fallthru
      _
    %v27 = vld [vmem:[%s1] sm:$0xff]
    %v28 = vld [vmem:[%s0] sm:$0xff]
    %v29 = vld [vmem:[%s0 + $0x8] sm:$0xff]
    %v30 = vld [vmem:[%s0 + $0x10] sm:$0xff]
    %v31 = vld [vmem:[%s0 + $0x18] sm:$0xff]
    %v32 = vld [vmem:[%s0 + $0x20] sm:$0xff]
    %v33 = vld [vmem:[%s0 + $0x28] sm:$0xff]
    %v34 = vld [vmem:[%s0 + $0x30] sm:$0xff]
    %v35 = vld [vmem:[%s0 + $0x38] sm:$0xff]
    %v36 = vld [vmem:[%s0 + $0x40] sm:$0xff]
    %v37 = vld [vmem:[%s0 + $0x48] sm:$0xff]
    %v38 = vld [vmem:[%s0 + $0x50] sm:$0xff]
    %v39 = vld [vmem:[%s0 + $0x58] sm:$0xff]
    %v40 = vld [vmem:[%s0 + $0x60] sm:$0xff]
    %v41 = vld [vmem:[%s0 + $0x68] sm:$0xff]
    %v42 = vld [vmem:[%s0 + $0x70] sm:$0xff]
    %v43 = vld [vmem:[%s0 + $0x78] sm:$0xff]
    %v44 = vld [vmem:[%s0 + $0x80] sm:$0xf]
    %v45 = vld [vmem:[%s0 + $0x88] sm:$0xf]
    %v46 = vld [vmem:[%s0 + $0x90] sm:$0xf]
    %v47 = vld [vmem:[%s0 + $0x98] sm:$0xf]
    %vm48 = vcmask 293888
    %v50 = vsel %vm48, %v27, 0
    %vm52 = vcmask 1043456
    %v54 = vsel %vm52, %v44, 0
    %v57 = vsel %vm52, %v45, 0
    %v60 = vsel %vm52, %v46, 0
    %v63 = vsel %vm52, %v47, 0
    %65 = vmatprep.subr.mxu0 %v29
    %66 = vmatpush1.msra.mxu0 %v28
    %67 = vmatprep.subr.mxu0 %v33
    %68 = vmatpush1.msra.mxu0 %v32
    %69 = vmatprep.subr.mxu0 %v37
    %70 = vmatpush1.msra.mxu0 %v36
    %71 = vmatprep.subr.mxu0 %v41
    %72 = vmatpush1.msra.mxu0 %v40
    %73 = vmatprep.subr.mxu0 %v57
    %74 = vmatpush1.msra.mxu0 %v54
    %75 = vmatprep.subr.mxu0 0.0
    %76 = vmatpush1.msra.mxu0 0.0
    %77 = vmatprep.subr.mxu0 0.0
    %78 = vmatpush1.msra.mxu0 0.0
    %79 = vmatprep.subr.mxu0 0.0
    %80 = vmatpush1.msra.mxu0 0.0
    %81 = vmatprep.subr.mxu0 0.0
    %82 = vmatpush1.msra.mxu0 0.0
    %83 = vmatprep.subr.mxu0 0.0
    %84 = vmatpush1.msra.mxu0 0.0
    %85 = vmatprep.subr.mxu0 0.0
    %86 = vmatpush1.msra.mxu0 0.0
    %87 = vmatprep.subr.mxu0 0.0
    %88 = vmatpush1.msra.mxu0 0.0
    %89 = vmatprep.subr.mxu0 0.0
    %90 = vmatpush1.msra.mxu0 0.0
    %91 = vmatprep.subr.mxu0 0.0
    %92 = vmatpush1.msra.mxu0 0.0
    %93 = vmatprep.subr.mxu0 0.0
    %94 = vmatpush1.msra.mxu0 0.0
    %95 = vmatprep.subr.mxu0 0.0
    %96 = vmatpush1.msra.mxu0 0.0
    %97 = vmatprep.subr.mxu0 0.0
    %98 = vmatpush1.msra.mxu0 0.0
    %99 = vmatprep.subr.mxu0 0.0
    %100 = vmatpush1.msra.mxu0 0.0
    %101 = vmatprep.subr.mxu0 0.0
    %102 = vmatpush1.msra.mxu0 0.0
    %103 = vmatprep.subr.mxu0 0.0
    %104 = vmatpush1.msra.mxu0 0.0
    %105 = vmatprep.subr.mxu0 0.0
    %106 = vmatpush1.msra.mxu0 0.0
    %107 = vmatprep.subr.mxu0 0.0
    %108 = vmatpush1.msra.mxu0 0.0
    %109 = vmatprep.subr.mxu0 0.0
    %110 = vmatpush1.msra.mxu0 0.0
    %111 = vmatprep.subr.mxu0 0.0
    %112 = vmatpush1.msra.mxu0 0.0
    %113 = vmatprep.subr.mxu0 0.0
    %114 = vmatpush1.msra.mxu0 0.0
    %115 = vmatprep.subr.mxu0 0.0
    %116 = vmatpush1.msra.mxu0 0.0
    %117 = vmatprep.subr.mxu0 0.0
    %118 = vmatpush1.msra.mxu0 0.0
    %119 = vmatprep.subr.mxu0 0.0
    %120 = vmatpush1.msra.mxu0 0.0
    %121 = vmatprep.subr.mxu0 0.0
    %122 = vmatpush1.msra.mxu0 0.0
    %123 = vmatprep.subr.mxu0 0.0
    %124 = vmatpush1.msra.mxu0 0.0
    %125 = vmatprep.subr.mxu0 0.0
    %126 = vmatpush1.msra.mxu0 0.0
    %127 = vmatprep.subr.mxu0 0.0
    %128 = vmatpush1.msra.mxu0 0.0
    %129 = vmatprep.mubr.f32.mxu0 0.0
    %130 = vmatmul.mubr.f32.gmra.mrb[0].mxu0 %v50
    %v131 = vpop.f32.mrb[0].mxu0
    %v132 = vadd.f32 0.0, %v131
    %v133 = vpop.f32.mrb[0].mxu0
    %v134 = vadd.f32 0.0, %v133
    %135 = vdwg.mxu0
    %136 = vmatprep.subr.mxu0 %v31
    %137 = vmatpush1.msra.mxu0 %v30
    %138 = vmatprep.subr.mxu0 %v35
    %139 = vmatpush1.msra.mxu0 %v34
    %140 = vmatprep.subr.mxu0 %v39
    %141 = vmatpush1.msra.mxu0 %v38
    %142 = vmatprep.subr.mxu0 %v43
    %143 = vmatpush1.msra.mxu0 %v42
    %144 = vmatprep.subr.mxu0 %v63
    %145 = vmatpush1.msra.mxu0 %v60
    %146 = vmatprep.subr.mxu0 0.0
    %147 = vmatpush1.msra.mxu0 0.0
    %148 = vmatprep.subr.mxu0 0.0
    %149 = vmatpush1.msra.mxu0 0.0
    %150 = vmatprep.subr.mxu0 0.0
    %151 = vmatpush1.msra.mxu0 0.0
    %152 = vmatprep.subr.mxu0 0.0
    %153 = vmatpush1.msra.mxu0 0.0
    %154 = vmatprep.subr.mxu0 0.0
    %155 = vmatpush1.msra.mxu0 0.0
    %156 = vmatprep.subr.mxu0 0.0
    %157 = vmatpush1.msra.mxu0 0.0
    %158 = vmatprep.subr.mxu0 0.0
    %159 = vmatpush1.msra.mxu0 0.0
    %160 = vmatprep.subr.mxu0 0.0
    %161 = vmatpush1.msra.mxu0 0.0
    %162 = vmatprep.subr.mxu0 0.0
    %163 = vmatpush1.msra.mxu0 0.0
    %164 = vmatprep.subr.mxu0 0.0
    %165 = vmatpush1.msra.mxu0 0.0
    %166 = vmatprep.subr.mxu0 0.0
    %167 = vmatpush1.msra.mxu0 0.0
    %168 = vmatprep.subr.mxu0 0.0
    %169 = vmatpush1.msra.mxu0 0.0
    %170 = vmatprep.subr.mxu0 0.0
    %171 = vmatpush1.msra.mxu0 0.0
    %172 = vmatprep.subr.mxu0 0.0
    %173 = vmatpush1.msra.mxu0 0.0
    %174 = vmatprep.subr.mxu0 0.0
    %175 = vmatpush1.msra.mxu0 0.0
    %176 = vmatprep.subr.mxu0 0.0
    %177 = vmatpush1.msra.mxu0 0.0
    %178 = vmatprep.subr.mxu0 0.0
    %179 = vmatpush1.msra.mxu0 0.0
    %180 = vmatprep.subr.mxu0 0.0
    %181 = vmatpush1.msra.mxu0 0.0
    %182 = vmatprep.subr.mxu0 0.0
    %183 = vmatpush1.msra.mxu0 0.0
    %184 = vmatprep.subr.mxu0 0.0
    %185 = vmatpush1.msra.mxu0 0.0
    %186 = vmatprep.subr.mxu0 0.0
    %187 = vmatpush1.msra.mxu0 0.0
    %188 = vmatprep.subr.mxu0 0.0
    %189 = vmatpush1.msra.mxu0 0.0
    %190 = vmatprep.subr.mxu0 0.0
    %191 = vmatpush1.msra.mxu0 0.0
    %192 = vmatprep.subr.mxu0 0.0
    %193 = vmatpush1.msra.mxu0 0.0
    %194 = vmatprep.subr.mxu0 0.0
    %195 = vmatpush1.msra.mxu0 0.0
    %196 = vmatprep.subr.mxu0 0.0
    %197 = vmatpush1.msra.mxu0 0.0
    %198 = vmatprep.subr.mxu0 0.0
    %199 = vmatpush1.msra.mxu0 0.0
    %200 = vmatprep.mubr.f32.mxu0 0.0
    %201 = vmatmul.mubr.f32.gmra.mrb[0].mxu0 %v50
    %v202 = vpop.f32.mrb[0].mxu0
    %v203 = vadd.f32 0.0, %v202
    %v204 = vpop.f32.mrb[0].mxu0
    %v205 = vadd.f32 0.0, %v204
    %206 = vdwg.mxu0
    %v207 = vmax.f32 %v132, %v134
    %v208 = vmax.f32 %v203, %v205
    %v209 = vmax.f32 %v207, %v208
    %v210 = vld [vmem:[%s2] sm:$0xff]
    %212 = vset.pattern.permute.xlu0 0
    %213 = vperm.xlu0 %212, %v210
    %v214 = vpop.permute.xlu0 %213
    %v216 = vadd.f32 %v209, %v214
    %v217 = vmax.f32 %v216, 0.0
    %v219 = vrot.slane %v217, 1
    %220 = vrot.lane.b32.xlu0 %v219, 64
    %v221 = vpop.permute.xlu0 %220
    %v223 = vrot.slane %v217, 2
    %v225 = vrot.slane %v217, 3
    %226 = vrot.lane.b32.xlu0 %v225, 64
    %v227 = vpop.permute.xlu0 %226
    %v229 = vrot.slane %v217, 4
    %v231 = vrot.slane %v217, 5
    %232 = vrot.lane.b32.xlu0 %v231, 64
    %v233 = vpop.permute.xlu0 %232
    %v235 = vrot.slane %v217, 6
    %v237 = vrot.slane %v217, 7
    %238 = vrot.lane.b32.xlu0 %v237, 64
    %v239 = vpop.permute.xlu0 %238
    %vm241 = vcmask 523264
    %v242 = vsel %vm241, %v217, %v221
    %v243 = vsel %vm241, %v223, %v227
    %v244 = vsel %vm241, %v229, %v233
    %v245 = vsel %vm241, %v235, %v239
    %246 = vrot.lane.b32.xlu0 %v217, 64
    %v247 = vpop.permute.xlu0 %246
    %250 = vrot.lane.b32.xlu0 %v223, 64
    %v251 = vpop.permute.xlu0 %250
    %254 = vrot.lane.b32.xlu0 %v229, 64
    %v255 = vpop.permute.xlu0 %254
    %258 = vrot.lane.b32.xlu0 %v235, 64
    %v259 = vpop.permute.xlu0 %258
    %v262 = vsel %vm241, %v247, %v219
    %v263 = vsel %vm241, %v251, %v225
    %v264 = vsel %vm241, %v255, %v231
    %v265 = vsel %vm241, %v259, %v237
    %v270 = vrot.slane %v262, 7
    %v271 = vrot.slane %v263, 7
    %v272 = vrot.slane %v264, 7
    %v273 = vrot.slane %v265, 7
    %vm278 = vcmask 1040384
    %v279 = vsel %vm278, %v242, %v270
    %v280 = vsel %vm278, %v243, %v271
    %v281 = vsel %vm278, %v244, %v272
    %v282 = vsel %vm278, %v245, %v273
    %v283 = vld [vmem:[%s3] sm:$0xff]
    %v284 = vld [vmem:[%s3 + $0x8] sm:$0xff]
    %v285 = vld [vmem:[%s3 + $0x10] sm:$0xff]
    %v286 = vld [vmem:[%s3 + $0x18] sm:$0xff]
    %v287 = vld [vmem:[%s3 + $0x20] sm:$0xff]
    %v288 = vld [vmem:[%s3 + $0x28] sm:$0xff]
    %v289 = vld [vmem:[%s3 + $0x30] sm:$0xff]
    %v290 = vld [vmem:[%s3 + $0x38] sm:$0xff]
    %v291 = vld [vmem:[%s3 + $0x40] sm:$0xff]
    %v292 = vld [vmem:[%s3 + $0x48] sm:$0xff]
    %v293 = vld [vmem:[%s3 + $0x50] sm:$0xff]
    %v294 = vld [vmem:[%s3 + $0x58] sm:$0xff]
    %v295 = vld [vmem:[%s3 + $0x60] sm:$0xff]
    %v296 = vld [vmem:[%s3 + $0x68] sm:$0xff]
    %v297 = vld [vmem:[%s3 + $0x70] sm:$0xff]
    %v298 = vld [vmem:[%s3 + $0x78] sm:$0xff]
    %v299 = vld [vmem:[%s3 + $0x80] sm:$0xff]
    %v300 = vld [vmem:[%s3 + $0x88] sm:$0xff]
    %v301 = vld [vmem:[%s3 + $0x90] sm:$0xff]
    %v302 = vld [vmem:[%s3 + $0x98] sm:$0xff]
    %v303 = vld [vmem:[%s3 + $0xa0] sm:$0xff]
    %v304 = vld [vmem:[%s3 + $0xa8] sm:$0xff]
    %v305 = vld [vmem:[%s3 + $0xb0] sm:$0xff]
    %v306 = vld [vmem:[%s3 + $0xb8] sm:$0xff]
    %v307 = vld [vmem:[%s3 + $0xc0] sm:$0xff]
    %v308 = vld [vmem:[%s3 + $0xc8] sm:$0xff]
    %v309 = vld [vmem:[%s3 + $0xd0] sm:$0xff]
    %v310 = vld [vmem:[%s3 + $0xd8] sm:$0xff]
    %v311 = vld [vmem:[%s3 + $0xe0] sm:$0xff]
    %v312 = vld [vmem:[%s3 + $0xe8] sm:$0xff]
    %v313 = vld [vmem:[%s3 + $0xf0] sm:$0xff]
    %v314 = vld [vmem:[%s3 + $0xf8] sm:$0xff]
    %v315 = vld [vmem:[%s3 + $0x100] sm:$0xff]
    %v316 = vld [vmem:[%s3 + $0x108] sm:$0xff]
    %v317 = vld [vmem:[%s3 + $0x110] sm:$0xff]
    %v318 = vld [vmem:[%s3 + $0x118] sm:$0xff]
    %v319 = vld [vmem:[%s3 + $0x120] sm:$0xff]
    %v320 = vld [vmem:[%s3 + $0x128] sm:$0xff]
    %v321 = vld [vmem:[%s3 + $0x130] sm:$0xff]
    %v322 = vld [vmem:[%s3 + $0x138] sm:$0xff]
    %v323 = vld [vmem:[%s3 + $0x140] sm:$0xff]
    %v324 = vld [vmem:[%s3 + $0x148] sm:$0xff]
    %v325 = vld [vmem:[%s3 + $0x150] sm:$0xff]
    %v326 = vld [vmem:[%s3 + $0x158] sm:$0xff]
    %v327 = vld [vmem:[%s3 + $0x160] sm:$0xff]
    %v328 = vld [vmem:[%s3 + $0x168] sm:$0xff]
    %v329 = vld [vmem:[%s3 + $0x170] sm:$0xff]
    %v330 = vld [vmem:[%s3 + $0x178] sm:$0xff]
    %v331 = vld [vmem:[%s3 + $0x180] sm:$0xff]
    %v332 = vld [vmem:[%s3 + $0x188] sm:$0xff]
    %v333 = vld [vmem:[%s3 + $0x190] sm:$0xff]
    %v334 = vld [vmem:[%s3 + $0x198] sm:$0xff]
    %v335 = vld [vmem:[%s3 + $0x1a0] sm:$0xff]
    %v336 = vld [vmem:[%s3 + $0x1a8] sm:$0xff]
    %v337 = vld [vmem:[%s3 + $0x1b0] sm:$0xff]
    %v338 = vld [vmem:[%s3 + $0x1b8] sm:$0xff]
    %v339 = vld [vmem:[%s3 + $0x1c0] sm:$0xff]
    %v340 = vld [vmem:[%s3 + $0x1c8] sm:$0xff]
    %v341 = vld [vmem:[%s3 + $0x1d0] sm:$0xff]
    %v342 = vld [vmem:[%s3 + $0x1d8] sm:$0xff]
    %v343 = vld [vmem:[%s3 + $0x1e0] sm:$0xff]
    %v344 = vld [vmem:[%s3 + $0x1e8] sm:$0xff]
    %v345 = vld [vmem:[%s3 + $0x1f0] sm:$0xff]
    %v346 = vld [vmem:[%s3 + $0x1f8] sm:$0xff]
    %v347 = vld [vmem:[%s4] sm:$0x1]
    %v349 = vlaneseq
    %v350 = vshrl.u32 %v349, 7
    %v351 = vsub.s32 0, %v350
    %v352 = vrot.slane %v347, %v351
    %354 = vmatprep.subr.mxu0 0.0
    %355 = vmatpush1.msra.mxu0 %v283
    %356 = vmatprep.subr.mxu0 0.0
    %357 = vmatpush1.msra.mxu0 %v284
    %358 = vmatprep.subr.mxu0 0.0
    %359 = vmatpush1.msra.mxu0 %v285
    %360 = vmatprep.subr.mxu0 0.0
    %361 = vmatpush1.msra.mxu0 %v286
    %362 = vmatprep.subr.mxu0 0.0
    %363 = vmatpush1.msra.mxu0 %v287
    %364 = vmatprep.subr.mxu0 0.0
    %365 = vmatpush1.msra.mxu0 %v288
    %366 = vmatprep.subr.mxu0 0.0
    %367 = vmatpush1.msra.mxu0 %v289
    %368 = vmatprep.subr.mxu0 0.0
    %369 = vmatpush1.msra.mxu0 %v290
    %370 = vmatprep.subr.mxu0 0.0
    %371 = vmatpush1.msra.mxu0 %v291
    %372 = vmatprep.subr.mxu0 0.0
    %373 = vmatpush1.msra.mxu0 %v292
    %374 = vmatprep.subr.mxu0 0.0
    %375 = vmatpush1.msra.mxu0 %v293
    %376 = vmatprep.subr.mxu0 0.0
    %377 = vmatpush1.msra.mxu0 %v294
    %378 = vmatprep.subr.mxu0 0.0
    %379 = vmatpush1.msra.mxu0 %v295
    %380 = vmatprep.subr.mxu0 0.0
    %381 = vmatpush1.msra.mxu0 %v296
    %382 = vmatprep.subr.mxu0 0.0
    %383 = vmatpush1.msra.mxu0 %v297
    %384 = vmatprep.subr.mxu0 0.0
    %385 = vmatpush1.msra.mxu0 %v298
    %386 = vmatprep.subr.mxu0 0.0
    %387 = vmatpush1.msra.mxu0 %v299
    %388 = vmatprep.subr.mxu0 0.0
    %389 = vmatpush1.msra.mxu0 %v300
    %390 = vmatprep.subr.mxu0 0.0
    %391 = vmatpush1.msra.mxu0 %v301
    %392 = vmatprep.subr.mxu0 0.0
    %393 = vmatpush1.msra.mxu0 %v302
    %394 = vmatprep.subr.mxu0 0.0
    %395 = vmatpush1.msra.mxu0 %v303
    %396 = vmatprep.subr.mxu0 0.0
    %397 = vmatpush1.msra.mxu0 %v304
    %398 = vmatprep.subr.mxu0 0.0
    %399 = vmatpush1.msra.mxu0 %v305
    %400 = vmatprep.subr.mxu0 0.0
    %401 = vmatpush1.msra.mxu0 %v306
    %402 = vmatprep.subr.mxu0 0.0
    %403 = vmatpush1.msra.mxu0 %v307
    %404 = vmatprep.subr.mxu0 0.0
    %405 = vmatpush1.msra.mxu0 %v308
    %406 = vmatprep.subr.mxu0 0.0
    %407 = vmatpush1.msra.mxu0 %v309
    %408 = vmatprep.subr.mxu0 0.0
    %409 = vmatpush1.msra.mxu0 %v310
    %410 = vmatprep.subr.mxu0 0.0
    %411 = vmatpush1.msra.mxu0 %v311
    %412 = vmatprep.subr.mxu0 0.0
    %413 = vmatpush1.msra.mxu0 %v312
    %414 = vmatprep.subr.mxu0 0.0
    %415 = vmatpush1.msra.mxu0 %v313
    %416 = vmatprep.subr.mxu0 0.0
    %417 = vmatpush1.msra.mxu0 %v314
    %418 = vmatprep.mubr.f32.mxu0 %v280
    %419 = vmatmul.mubr.f32.gmra.mrb[0].mxu0 %v279
    %v420 = vpop.f32.mrb[0].mxu0
    %v421 = vadd.f32 %v352, %v420
    %v422 = vpop.f32.mrb[0].mxu0
    %423 = vdwg.mxu0
    %424 = vmatprep.subr.mxu0 0.0
    %425 = vmatpush1.msra.mxu0 %v315
    %426 = vmatprep.subr.mxu0 0.0
    %427 = vmatpush1.msra.mxu0 %v316
    %428 = vmatprep.subr.mxu0 0.0
    %429 = vmatpush1.msra.mxu0 %v317
    %430 = vmatprep.subr.mxu0 0.0
    %431 = vmatpush1.msra.mxu0 %v318
    %432 = vmatprep.subr.mxu0 0.0
    %433 = vmatpush1.msra.mxu0 %v319
    %434 = vmatprep.subr.mxu0 0.0
    %435 = vmatpush1.msra.mxu0 %v320
    %436 = vmatprep.subr.mxu0 0.0
    %437 = vmatpush1.msra.mxu0 %v321
    %438 = vmatprep.subr.mxu0 0.0
    %439 = vmatpush1.msra.mxu0 %v322
    %440 = vmatprep.subr.mxu0 0.0
    %441 = vmatpush1.msra.mxu0 %v323
    %442 = vmatprep.subr.mxu0 0.0
    %443 = vmatpush1.msra.mxu0 %v324
    %444 = vmatprep.subr.mxu0 0.0
    %445 = vmatpush1.msra.mxu0 %v325
    %446 = vmatprep.subr.mxu0 0.0
    %447 = vmatpush1.msra.mxu0 %v326
    %448 = vmatprep.subr.mxu0 0.0
    %449 = vmatpush1.msra.mxu0 %v327
    %450 = vmatprep.subr.mxu0 0.0
    %451 = vmatpush1.msra.mxu0 %v328
    %452 = vmatprep.subr.mxu0 0.0
    %453 = vmatpush1.msra.mxu0 %v329
    %454 = vmatprep.subr.mxu0 0.0
    %455 = vmatpush1.msra.mxu0 %v330
    %456 = vmatprep.subr.mxu0 0.0
    %457 = vmatpush1.msra.mxu0 %v331
    %458 = vmatprep.subr.mxu0 0.0
    %459 = vmatpush1.msra.mxu0 %v332
    %460 = vmatprep.subr.mxu0 0.0
    %461 = vmatpush1.msra.mxu0 %v333
    %462 = vmatprep.subr.mxu0 0.0
    %463 = vmatpush1.msra.mxu0 %v334
    %464 = vmatprep.subr.mxu0 0.0
    %465 = vmatpush1.msra.mxu0 %v335
    %466 = vmatprep.subr.mxu0 0.0
    %467 = vmatpush1.msra.mxu0 %v336
    %468 = vmatprep.subr.mxu0 0.0
    %469 = vmatpush1.msra.mxu0 %v337
    %470 = vmatprep.subr.mxu0 0.0
    %471 = vmatpush1.msra.mxu0 %v338
    %472 = vmatprep.subr.mxu0 0.0
    %473 = vmatpush1.msra.mxu0 %v339
    %474 = vmatprep.subr.mxu0 0.0
    %475 = vmatpush1.msra.mxu0 %v340
    %476 = vmatprep.subr.mxu0 0.0
    %477 = vmatpush1.msra.mxu0 %v341
    %478 = vmatprep.subr.mxu0 0.0
    %479 = vmatpush1.msra.mxu0 %v342
    %480 = vmatprep.subr.mxu0 0.0
    %481 = vmatpush1.msra.mxu0 %v343
    %482 = vmatprep.subr.mxu0 0.0
    %483 = vmatpush1.msra.mxu0 %v344
    %484 = vmatprep.subr.mxu0 0.0
    %485 = vmatpush1.msra.mxu0 %v345
    %486 = vmatprep.subr.mxu0 0.0
    %487 = vmatpush1.msra.mxu0 %v346
    %488 = vmatprep.mubr.f32.mxu0 %v282
    %489 = vmatmul.mubr.f32.gmra.mrb[0].mxu0 %v281
    %v490 = vpop.f32.mrb[0].mxu0
    %v491 = vadd.f32 %v421, %v490
    %v492 = vpop.f32.mrb[0].mxu0
    %493 = vdwg.mxu0
    %v494 = vmax.f32 %v491, 0.0
    %v495 = vld [vmem:[%s5] sm:$0xff]
    %v496 = vld [vmem:[%s5 + $0x8] sm:$0xff]
    %v497 = vld [vmem:[%s5 + $0x10] sm:$0xff]
    %v498 = vld [vmem:[%s5 + $0x18] sm:$0xff]
    %v499 = vld [vmem:[%s6] sm:$0x1]
    %v501 = vlaneseq
    %v502 = vshrl.u32 %v501, 7
    %v503 = vsub.s32 0, %v502
    %v504 = vrot.slane %v499, %v503
    %vm506 = vcmask 261120
    %v508 = vsel %vm506, %v494, 0
    %510 = vmatprep.subr.mxu0 0.0
    %511 = vmatpush1.msra.mxu0 %v495
    %512 = vmatprep.subr.mxu0 0.0
    %513 = vmatpush1.msra.mxu0 %v496
    %514 = vmatprep.subr.mxu0 0.0
    %515 = vmatpush1.msra.mxu0 %v497
    %516 = vmatprep.subr.mxu0 0.0
    %517 = vmatpush1.msra.mxu0 %v498
    %518 = vmatprep.subr.mxu0 0.0
    %519 = vmatpush1.msra.mxu0 0.0
    %520 = vmatprep.subr.mxu0 0.0
    %521 = vmatpush1.msra.mxu0 0.0
    %522 = vmatprep.subr.mxu0 0.0
    %523 = vmatpush1.msra.mxu0 0.0
    %524 = vmatprep.subr.mxu0 0.0
    %525 = vmatpush1.msra.mxu0 0.0
    %526 = vmatprep.subr.mxu0 0.0
    %527 = vmatpush1.msra.mxu0 0.0
    %528 = vmatprep.subr.mxu0 0.0
    %529 = vmatpush1.msra.mxu0 0.0
    %530 = vmatprep.subr.mxu0 0.0
    %531 = vmatpush1.msra.mxu0 0.0
    %532 = vmatprep.subr.mxu0 0.0
    %533 = vmatpush1.msra.mxu0 0.0
    %534 = vmatprep.subr.mxu0 0.0
    %535 = vmatpush1.msra.mxu0 0.0
    %536 = vmatprep.subr.mxu0 0.0
    %537 = vmatpush1.msra.mxu0 0.0
    %538 = vmatprep.subr.mxu0 0.0
    %539 = vmatpush1.msra.mxu0 0.0
    %540 = vmatprep.subr.mxu0 0.0
    %541 = vmatpush1.msra.mxu0 0.0
    %542 = vmatprep.subr.mxu0 0.0
    %543 = vmatpush1.msra.mxu0 0.0
    %544 = vmatprep.subr.mxu0 0.0
    %545 = vmatpush1.msra.mxu0 0.0
    %546 = vmatprep.subr.mxu0 0.0
    %547 = vmatpush1.msra.mxu0 0.0
    %548 = vmatprep.subr.mxu0 0.0
    %549 = vmatpush1.msra.mxu0 0.0
    %550 = vmatprep.subr.mxu0 0.0
    %551 = vmatpush1.msra.mxu0 0.0
    %552 = vmatprep.subr.mxu0 0.0
    %553 = vmatpush1.msra.mxu0 0.0
    %554 = vmatprep.subr.mxu0 0.0
    %555 = vmatpush1.msra.mxu0 0.0
    %556 = vmatprep.subr.mxu0 0.0
    %557 = vmatpush1.msra.mxu0 0.0
    %558 = vmatprep.subr.mxu0 0.0
    %559 = vmatpush1.msra.mxu0 0.0
    %560 = vmatprep.subr.mxu0 0.0
    %561 = vmatpush1.msra.mxu0 0.0
    %562 = vmatprep.subr.mxu0 0.0
    %563 = vmatpush1.msra.mxu0 0.0
    %564 = vmatprep.subr.mxu0 0.0
    %565 = vmatpush1.msra.mxu0 0.0
    %566 = vmatprep.subr.mxu0 0.0
    %567 = vmatpush1.msra.mxu0 0.0
    %568 = vmatprep.subr.mxu0 0.0
    %569 = vmatpush1.msra.mxu0 0.0
    %570 = vmatprep.subr.mxu0 0.0
    %571 = vmatpush1.msra.mxu0 0.0
    %572 = vmatprep.subr.mxu0 0.0
    %573 = vmatpush1.msra.mxu0 0.0
    %574 = vmatprep.mubr.f32.mxu0 0.0
    %575 = vmatmul.mubr.f32.gmra.mrb[0].mxu0 %v508
    %v576 = vpop.f32.mrb[0].mxu0
    %v577 = vadd.f32 %v504, %v576
    %v578 = vpop.f32.mrb[0].mxu0
    %579 = vdwg.mxu0
    %vm580 = vcmask 74752
    %v581 = vsel %vm580, %v577, -inf
    %582 = vmax.xlane.f32.xlu0 %v581
    %v583 = vpop.xlane.xlu0 %582
    %v584 = vsub.f32 %v577, %v583
    %v585 = vmul.f32 %v584, 1.442695
    %v586 = vpow.pop %v585
    %v587 = vsel %vm580, %v586, 0.0
    %588 = vadd.xlane.f32.xlu0 %v587
    %v589 = vpop.xlane.xlu0 %588
    %v590 = vlog2.pop %v589
    %v591 = vmul.f32 %v590, 0.6931472
    %v592 = vsub.f32 %v584, %v591
    %593 = vst.msk [vmem:[#allocation2] sm:$0x3] %vm580, %v592
    // Predicated region
    $region30: #{mynet_forward.1} parent=1 // pred_check
      _
    $region31: #{mynet_forward.1} parent=1 // pred_check_branch
      %595 = sbr.rel (0) target = $region33
    $region32: #{mynet_forward.1} parent=1 // pred_region
      %s597 = ssub.s32 32, 32
      %598 = vsyncadd [#allocation3], %s597
      %s600 = sshll.u32 [#allocation2], 4
      %s601 = int_to_ptr.vmem [resolvable:$true] %s600
      %603 = dma.vmem_to_hbm [thread:$0]  %s601, 32, %s7, [#allocation3]
    $region33: #{mynet_forward.1} parent=1 // pred_fallthru
      _
    // Predicated region
    $region34: #{mynet_forward.1} parent=1 // pred_check
      _
    $region35: #{mynet_forward.1} parent=1 // pred_check_branch
      %605 = sbr.rel (0) target = $region37
    $region36: #{mynet_forward.1} parent=1 // pred_region
      %606 = dma.done [#allocation3], 32
    $region37: #{mynet_forward.1} parent=1 // pred_fallthru
      _
    %607 = vsyncpa [#allocation3], 1

</llo_original>
